<compile_context>
chip_gen: v7x
topology: tpu7x:2x2x1
jax: 0.10.0
libtpu: 0.0.40
codegen_flags: <defaults>
</compile_context>

<pallas_src>
import functools

import jax
import jax.numpy as jnp
from jax import lax
from jax.experimental import pallas as pl
from jax.experimental.pallas import tpu as pltpu


_VMEM_LIMIT = 48 * 1024 * 1024   # safe on v5e/v6e (128 MiB) and v7x (64 MiB)


def _round_up(x, m):
    return ((x + m - 1) // m) * m


def plan_tiles(batch, indim, outdim, tm=512, tn=512, tk=1024):
    """Clamp tile sizes to the (padded) problem and derive padded dims."""
    tm = min(tm, _round_up(batch, 8))
    tk = min(tk, _round_up(indim, 128))
    tn = min(tn, _round_up(outdim, 128))
    Mp = _round_up(batch, tm)
    Kp = _round_up(indim, tk)
    Np = _round_up(outdim, tn)
    # v7x megacore: if there is only a single (i, j) tile but N is splittable,
    # halve tn so both TensorCores get work.  No effect on v5e/v6e (1 TC).
    if Mp // tm == 1 and Np // tn == 1 and Np // 128 >= 2:
        tn = _round_up(Np // 2, 128)
        Np = _round_up(outdim, tn)
    return tm, tn, tk, Mp, Kp, Np


def prepare_params(gamma, beta, running_mean, running_var, weight, bias,
                   *, eps, Kp, Np):
    """Fold BN into scale/shift; pad / transpose / cast params once (init)."""
    outdim, indim = weight.shape
    inv_std = lax.rsqrt(running_var.astype(jnp.float32) + eps)
    scale = gamma.astype(jnp.float32) * inv_std
    shift = beta.astype(jnp.float32) - running_mean.astype(jnp.float32) * scale
    # Padded K features keep scale = shift = 0  ->  silu(0) = 0  -> no effect.
    scale_p = jnp.zeros((1, Kp), jnp.float32).at[0, :indim].set(scale)
    shift_p = jnp.zeros((1, Kp), jnp.float32).at[0, :indim].set(shift)
    # Weight pre-transposed to [K, N] (MXU-friendly feed, no per-tile vxpose)
    # and cast to bf16 so the MXU runs at its bf16 rate with half the DMA.
    w_t = jnp.zeros((Kp, Np), jnp.bfloat16).at[:indim, :outdim].set(
        weight.T.astype(jnp.bfloat16))
    bias_p = jnp.zeros((1, Np), jnp.float32).at[0, :outdim].set(
        bias.astype(jnp.float32))
    return scale_p, shift_p, w_t, bias_p


def _bn_silu_kernel(x_ref, scale_ref, shift_ref, h_ref):
    # Fused BN (folded to scale/shift) + SiLU, f32 math (v5e VPU/EUP lack bf16).
    h = x_ref[...] * scale_ref[...] + shift_ref[...]
    # SiLU = h * sigmoid(h); exp and approx reciprocal both land on the EUP.
    h = h * pl.reciprocal(1.0 + jnp.exp(-h), approx=True)
    h_ref[...] = h.astype(h_ref.dtype)   # emit bf16 for the MXU pass


def _matmul_bias_kernel(h_ref, w_ref, bias_ref, o_ref):
    k = pl.program_id(2)

    @pl.when(k == 0)
    def _():
        o_ref[...] = jnp.zeros_like(o_ref)

    # bf16 x bf16 on the MXU, f32 accumulation directly in the output block
    # (block index (i, j) is constant across k, so it stays VMEM-resident).
    o_ref[...] += jnp.dot(h_ref[...], w_ref[...],
                          preferred_element_type=jnp.float32)

    @pl.when(k == pl.num_programs(2) - 1)
    def _():
        o_ref[...] += bias_ref[...]   # bias added once, in the epilogue


@functools.partial(jax.jit, static_argnames=("outdim", "tm", "tn", "tk"))
def linear_block_forward(x, scale_p, shift_p, w_t, bias_p, *,
                         outdim, tm, tn, tk):
    """x: [B, indim] f32; prepared params from prepare_params()."""
    B, indim = x.shape
    Kp, Np = w_t.shape
    Mp = _round_up(B, tm)
    assert Mp % tm == 0 and Kp % tk == 0 and Np % tn == 0

    if (B, indim) != (Mp, Kp):
        # Padded rows/cols are sliced off; padded K cols have scale=shift=0.
        x_p = jnp.zeros((Mp, Kp), x.dtype).at[:B, :indim].set(x)
    else:
        x_p = x

    # Pass 1: BN + SiLU, computed once per element, emitted as bf16.
    h = pl.pallas_call(
        _bn_silu_kernel,
        out_shape=jax.ShapeDtypeStruct((Mp, Kp), jnp.bfloat16),
        grid_spec=pltpu.PrefetchScalarGridSpec(
            num_scalar_prefetch=0,
            grid=(Mp // tm, Kp // tk),
            in_specs=[
                pl.BlockSpec((tm, tk), lambda i, k: (i, k)),   # x
                pl.BlockSpec((1, tk), lambda i, k: (0, k)),    # bn scale
                pl.BlockSpec((1, tk), lambda i, k: (0, k)),    # bn shift
            ],
            out_specs=pl.BlockSpec((tm, tk), lambda i, k: (i, k)),
        ),
        compiler_params=pltpu.CompilerParams(
            dimension_semantics=("parallel", "parallel"),
            vmem_limit_bytes=_VMEM_LIMIT),
    )(x_p, scale_p, shift_p)

    # Pass 2: y = h @ W^T + b as [tm,tk] @ [tk,tn] tiles on the MXU.
    out = pl.pallas_call(
        _matmul_bias_kernel,
        out_shape=jax.ShapeDtypeStruct((Mp, Np), jnp.float32),
        grid_spec=pltpu.PrefetchScalarGridSpec(
            num_scalar_prefetch=0,
            grid=(Mp // tm, Np // tn, Kp // tk),
            in_specs=[
                pl.BlockSpec((tm, tk), lambda i, j, k: (i, k)),  # h (bf16)
                pl.BlockSpec((tk, tn), lambda i, j, k: (k, j)),  # W^T (bf16)
                pl.BlockSpec((1, tn), lambda i, j, k: (0, j)),   # bias
            ],
            out_specs=pl.BlockSpec((tm, tn), lambda i, j, k: (i, j)),
        ),
        compiler_params=pltpu.CompilerParams(
            dimension_semantics=("parallel", "parallel", "arbitrary"),
            vmem_limit_bytes=_VMEM_LIMIT),
    )(h, w_t, bias_p)

    return out[:B, :outdim].astype(x.dtype)


if __name__ == "__main__":
    key = jax.random.PRNGKey(0)
    k_x, k_w, k_b, k_g, k_bt, k_m, k_v = jax.random.split(key, 7)

    batch, indim, outdim = 8, 32, 32
    eps = 1e-5

    bound = 1.0 / (indim ** 0.5)
    x = jax.random.normal(k_x, (batch, indim), dtype=jnp.float32)
    weight = jax.random.uniform(k_w, (outdim, indim), minval=-bound,
                                maxval=bound, dtype=jnp.float32)
    bias = jax.random.uniform(k_b, (outdim,), minval=-bound, maxval=bound,
                              dtype=jnp.float32)

    # BatchNorm1d parameters / running statistics (inference mode).
    gamma = 1.0 + 0.1 * jax.random.normal(k_g, (indim,), dtype=jnp.float32)
    beta = 0.1 * jax.random.normal(k_bt, (indim,), dtype=jnp.float32)
    running_mean = 0.1 * jax.random.normal(k_m, (indim,), dtype=jnp.float32)
    running_var = jax.random.uniform(k_v, (indim,), minval=0.5, maxval=1.5,
                                     dtype=jnp.float32)

    # Tile plan + one-time parameter preparation (init-time, not per-call).
    tm, tn, tk, Mp, Kp, Np = plan_tiles(batch, indim, outdim)
    scale_p, shift_p, w_t, bias_p = prepare_params(
        gamma, beta, running_mean, running_var, weight, bias,
        eps=eps, Kp=Kp, Np=Np)

    out = linear_block_forward(x, scale_p, shift_p, w_t, bias_p,
                               outdim=outdim, tm=tm, tn=tn, tk=tk)
    out = jax.block_until_ready(out)

    # Pure-JAX f32 reference (eval-mode BN + SiLU + identity Dropout + Linear).
    h_ref = (x - running_mean) / jnp.sqrt(running_var + eps) * gamma + beta
    h_ref = h_ref * jax.nn.sigmoid(h_ref)
    ref = h_ref @ weight.T + bias

    assert out.shape == (batch, outdim)
    # bf16 MXU operands + EUP approx reciprocal => slightly looser tolerance.
    assert jnp.allclose(out, ref, atol=2e-2, rtol=2e-2), "mismatch vs reference"

    print("KERNEL_OK")
</pallas_src>

<mosaic_0001>
module attributes {stable_mosaic.version = 11 : i64} {
  func.func @_bn_silu_kernel(%arg0: i32, %arg1: i32, %arg2: memref<8x128xf32, #tpu.memory_space<vmem>>, %arg3: memref<1x128xf32, #tpu.memory_space<vmem>>, %arg4: memref<1x128xf32, #tpu.memory_space<vmem>>, %arg5: memref<8x128xbf16, #tpu.memory_space<vmem>>) attributes {dimension_semantics = [#tpu.dimension_semantics<parallel>, #tpu.dimension_semantics<parallel>], iteration_bounds = array<i64: 1, 1>, scalar_prefetch = 0 : i64, scratch_operands = 0 : i64, tpu.core_type = #tpu.core_type<tc>, window_params = [{transform_indices = @transform_0, window_bounds = array<i64: 8, 128>}, {transform_indices = @transform_1, window_bounds = array<i64: 1, 128>}, {transform_indices = @transform_2, window_bounds = array<i64: 1, 128>}, {transform_indices = @transform_3, window_bounds = array<i64: 8, 128>}]} {
    %c0 = arith.constant 0 : index
    %c0_0 = arith.constant 0 : index
    %0 = vector.load %arg2[%c0, %c0_0] : memref<8x128xf32, #tpu.memory_space<vmem>>, vector<8x128xf32>
    %c0_1 = arith.constant 0 : index
    %c0_2 = arith.constant 0 : index
    %1 = vector.load %arg3[%c0_1, %c0_2] : memref<1x128xf32, #tpu.memory_space<vmem>>, vector<1x128xf32>
    %2 = vector.broadcast %1 : vector<1x128xf32> to vector<8x128xf32>
    %3 = arith.mulf %0, %2 : vector<8x128xf32>
    %c0_3 = arith.constant 0 : index
    %c0_4 = arith.constant 0 : index
    %4 = vector.load %arg4[%c0_3, %c0_4] : memref<1x128xf32, #tpu.memory_space<vmem>>, vector<1x128xf32>
    %5 = vector.broadcast %4 : vector<1x128xf32> to vector<8x128xf32>
    %6 = arith.addf %3, %5 : vector<8x128xf32>
    %cst = arith.constant 0.000000e+00 : f32
    %7 = vector.broadcast %cst : f32 to vector<8x128xf32>
    %8 = arith.subf %7, %6 : vector<8x128xf32>
    %9 = math.exp %8 : vector<8x128xf32>
    %cst_5 = arith.constant 1.000000e+00 : f32
    %10 = vector.broadcast %cst_5 : f32 to vector<8x128xf32>
    %11 = arith.addf %10, %9 : vector<8x128xf32>
    %12 = tpu.reciprocal %11 {approx = true} : vector<8x128xf32> -> vector<8x128xf32>
    %13 = arith.mulf %6, %12 : vector<8x128xf32>
    %14 = arith.truncf %13 : vector<8x128xf32> to vector<8x128xbf16>
    %c0_6 = arith.constant 0 : index
    %c0_7 = arith.constant 0 : index
    %15 = vector.load %arg5[%c0_6, %c0_7] : memref<8x128xbf16, #tpu.memory_space<vmem>>, vector<8x128xbf16>
    tpu.vector_store %arg5[%c0_6, %c0_7], %14 {strides = array<i32>} : memref<8x128xbf16, #tpu.memory_space<vmem>>, vector<8x128xbf16>,
    return
  }
  func.func @transform_0(%arg0: i32, %arg1: i32) -> (i32, i32) {
    %c0_i32 = arith.constant 0 : i32
    return %arg0, %arg1 : i32, i32
  }
  func.func @transform_1(%arg0: i32, %arg1: i32) -> (i32, i32) {
    %c0_i32 = arith.constant 0 : i32
    %c0_i32_0 = arith.constant 0 : i32
    return %c0_i32, %arg1 : i32, i32
  }
  func.func @transform_2(%arg0: i32, %arg1: i32) -> (i32, i32) {
    %c0_i32 = arith.constant 0 : i32
    %c0_i32_0 = arith.constant 0 : i32
    return %c0_i32, %arg1 : i32, i32
  }
  func.func @transform_3(%arg0: i32, %arg1: i32) -> (i32, i32) {
    %c0_i32 = arith.constant 0 : i32
    return %arg0, %arg1 : i32, i32
  }
}

module attributes {stable_mosaic.version = 11 : i64} {
  func.func @_matmul_bias_kernel(%arg0: i32, %arg1: i32, %arg2: i32, %arg3: memref<8x128xbf16, #tpu.memory_space<vmem>>, %arg4: memref<128x128xbf16, #tpu.memory_space<vmem>>, %arg5: memref<1x128xf32, #tpu.memory_space<vmem>>, %arg6: memref<8x128xf32, #tpu.memory_space<vmem>>) attributes {dimension_semantics = [#tpu.dimension_semantics<parallel>, #tpu.dimension_semantics<parallel>, #tpu.dimension_semantics<arbitrary>], iteration_bounds = array<i64: 1, 1, 1>, scalar_prefetch = 0 : i64, scratch_operands = 0 : i64, tpu.core_type = #tpu.core_type<tc>, window_params = [{transform_indices = @transform_0, window_bounds = array<i64: 8, 128>}, {transform_indices = @transform_1, window_bounds = array<i64: 128, 128>}, {transform_indices = @transform_2, window_bounds = array<i64: 1, 128>}, {transform_indices = @transform_3, window_bounds = array<i64: 8, 128>}]} {
    %c0_i32 = arith.constant 0 : i32
    %0 = arith.cmpi eq, %arg2, %c0_i32 : i32
    %1 = arith.extui %0 : i1 to i32
    %c0_i32_0 = arith.constant 0 : i32
    %2 = arith.cmpi ne, %1, %c0_i32_0 : i32
    scf.if %2 {
      %cst_10 = arith.constant 0.000000e+00 : f32
      %12 = vector.broadcast %cst_10 : f32 to vector<8x128xf32>
      %c0_11 = arith.constant 0 : index
      %c0_12 = arith.constant 0 : index
      %13 = vector.load %arg6[%c0_11, %c0_12] : memref<8x128xf32, #tpu.memory_space<vmem>>, vector<8x128xf32>
      tpu.vector_store %arg6[%c0_11, %c0_12], %12 {strides = array<i32>} : memref<8x128xf32, #tpu.memory_space<vmem>>, vector<8x128xf32>,
    } else {
    }
    %c0 = arith.constant 0 : index
    %c0_1 = arith.constant 0 : index
    %3 = vector.load %arg6[%c0, %c0_1] : memref<8x128xf32, #tpu.memory_space<vmem>>, vector<8x128xf32>
    %c0_2 = arith.constant 0 : index
    %c0_3 = arith.constant 0 : index
    %4 = vector.load %arg3[%c0_2, %c0_3] : memref<8x128xbf16, #tpu.memory_space<vmem>>, vector<8x128xbf16>
    %c0_4 = arith.constant 0 : index
    %c0_5 = arith.constant 0 : index
    %5 = vector.load %arg4[%c0_4, %c0_5] : memref<128x128xbf16, #tpu.memory_space<vmem>>, vector<128x128xbf16>
    %cst = arith.constant dense<0.000000e+00> : vector<8x128xf32>
    %6 = tpu.matmul %4, %5, %cst {dimension_numbers = #tpu.dot_dimension_numbers<[1], [0], [0], [1], [0, 0, 1, 1], [], []>} : vector<8x128xbf16>, vector<128x128xbf16>, vector<8x128xf32> -> vector<8x128xf32>
    %7 = arith.addf %3, %6 : vector<8x128xf32>
    %c0_6 = arith.constant 0 : index
    %c0_7 = arith.constant 0 : index
    %8 = vector.load %arg6[%c0_6, %c0_7] : memref<8x128xf32, #tpu.memory_space<vmem>>, vector<8x128xf32>
    tpu.vector_store %arg6[%c0_6, %c0_7], %7 {strides = array<i32>} : memref<8x128xf32, #tpu.memory_space<vmem>>, vector<8x128xf32>,
    %c0_i32_8 = arith.constant 0 : i32
    %9 = arith.cmpi eq, %arg2, %c0_i32_8 : i32
    %10 = arith.extui %9 : i1 to i32
    %c0_i32_9 = arith.constant 0 : i32
    %11 = arith.cmpi ne, %10, %c0_i32_9 : i32
    scf.if %11 {
      %c0_10 = arith.constant 0 : index
      %c0_11 = arith.constant 0 : index
      %12 = vector.load %arg6[%c0_10, %c0_11] : memref<8x128xf32, #tpu.memory_space<vmem>>, vector<8x128xf32>
      %c0_12 = arith.constant 0 : index
      %c0_13 = arith.constant 0 : index
      %13 = vector.load %arg5[%c0_12, %c0_13] : memref<1x128xf32, #tpu.memory_space<vmem>>, vector<1x128xf32>
      %14 = vector.broadcast %13 : vector<1x128xf32> to vector<8x128xf32>
      %15 = arith.addf %12, %14 : vector<8x128xf32>
      %c0_14 = arith.constant 0 : index
      %c0_15 = arith.constant 0 : index
      %16 = vector.load %arg6[%c0_14, %c0_15] : memref<8x128xf32, #tpu.memory_space<vmem>>, vector<8x128xf32>
      tpu.vector_store %arg6[%c0_14, %c0_15], %15 {strides = array<i32>} : memref<8x128xf32, #tpu.memory_space<vmem>>, vector<8x128xf32>,
    } else {
    }
    return
  }
  func.func @transform_0(%arg0: i32, %arg1: i32, %arg2: i32) -> (i32, i32) {
    %c0_i32 = arith.constant 0 : i32
    return %arg0, %arg2 : i32, i32
  }
  func.func @transform_1(%arg0: i32, %arg1: i32, %arg2: i32) -> (i32, i32) {
    %c0_i32 = arith.constant 0 : i32
    return %arg2, %arg1 : i32, i32
  }
  func.func @transform_2(%arg0: i32, %arg1: i32, %arg2: i32) -> (i32, i32) {
    %c0_i32 = arith.constant 0 : i32
    %c0_i32_0 = arith.constant 0 : i32
    return %c0_i32, %arg1 : i32, i32
  }
  func.func @transform_3(%arg0: i32, %arg1: i32, %arg2: i32) -> (i32, i32) {
    %c0_i32 = arith.constant 0 : i32
    return %arg0, %arg1 : i32, i32
  }
}

</mosaic_0001>

<llo_original>
// kernel: linear_block_forward.3
$region0: #{linear_block_forward.3}
  #allocation0 [shape = 'u32[]', space=smem, size = 0x4, offset = 0x4, fixed_abs, tag = 'smem constant byte address 0x4 - core index']
  #allocation1 [shape = 'u32[144,128]{1,0:T(1,128)}', space=vmem, size = 0x12000, scoped, tag = 'internal scratch']
  %s0 = inlined_call_operand.vmem [shape: bf16[8,128], index: 0, kind: input, shape index: {}]
  %s1 = inlined_call_operand.hbm [shape: bf16[128,128], index: 1, kind: input, shape index: {}]
  %s2 = inlined_call_operand.vmem [shape: f32[1,128], index: 2, kind: input, shape index: {}]
  %s3 = inlined_call_operand.hbm [shape: f32[8,128], index: 3, kind: output, shape index: {}]
  %s4 = sld [smem:[#allocation0]]
  $region34: #{linear_block_forward.3} parent=0
    _
  %s6 = ssub.s32 1, %s4
  %s7 = scalar_select 0, %s6, %s4
  $region1: #{linear_block_forward.3} parent=0
    #allocation2 [shape = 'u8[32768]{0}', space=vmem, size = 0x8000, scoped, tag = 'input window, operand 1, single buffered']
    #allocation3 [shape = 's32[1]{0}', space=sflag, size = 0x4, scoped, tag = 'scoped memory for linear_block_forward.3']
    #allocation4 [shape = 's32[1]{0}', space=sflag, size = 0x4, scoped, tag = 'scoped memory for linear_block_forward.3']
    #allocation5 [shape = 'u8[4096]{0}', space=vmem, size = 0x1000, scoped, tag = 'output window, operand 0, single buffered']
    %8 = vsyncpa [#allocation3], 0
    %9 = vsyncpa [#allocation4], 0
    // Predicated region
    $region2: #{linear_block_forward.3} parent=1 // pred_check
      _
    $region3: #{linear_block_forward.3} parent=1 // pred_check_branch
      %11 = sbr.rel (0) target = $region5
    $region4: #{linear_block_forward.3} parent=1 // pred_region
      _
    $region5: #{linear_block_forward.3} parent=1 // pred_fallthru
      _
    // Predicated region
    $region6: #{linear_block_forward.3} parent=1 // pred_check
      _
    $region7: #{linear_block_forward.3} parent=1 // pred_check_branch
      %13 = sbr.rel (0) target = $region9
    $region8: #{linear_block_forward.3} parent=1 // pred_region
      %s15 = ssub.s32 1024, 1024
      %16 = vsyncadd [#allocation3], %s15
      %s17 = sshll.u32 [#allocation2], 4
      %s18 = int_to_ptr.vmem [resolvable:$true] %s17
      %23 = dma.hbm_to_vmem [thread:$0]  %s1, 1024, %s18, [#allocation3], 64, 64, 4
    $region9: #{linear_block_forward.3} parent=1 // pred_fallthru
      _
    // Predicated region
    $region10: #{linear_block_forward.3} parent=1 // pred_check
      _
    $region11: #{linear_block_forward.3} parent=1 // pred_check_branch
      %25 = sbr.rel (0) target = $region13
    $region12: #{linear_block_forward.3} parent=1 // pred_region
      _
    $region13: #{linear_block_forward.3} parent=1 // pred_fallthru
      _
    // Predicated region
    $region14: #{linear_block_forward.3} parent=1 // pred_check
      _
    $region15: #{linear_block_forward.3} parent=1 // pred_check_branch
      %27 = sbr.rel (0) target = $region17
    $region16: #{linear_block_forward.3} parent=1 // pred_region
      %28 = dma.done [#allocation3], 1024
    $region17: #{linear_block_forward.3} parent=1 // pred_fallthru
      _
    %p30 = scmp.eq.s32.totalorder 0, 0
    // Predicated region
    $region18: #{linear_block_forward.3} parent=1 // pred_check
      %p31 = pneg %p30
    $region19: #{linear_block_forward.3} parent=1 // pred_check_branch
      %33 = sbr.rel (%p31) target = $region21
    $region20: #{linear_block_forward.3} parent=1 // pred_region
      %34 = vst [vmem:[#allocation5] sm:$0xff] 0.0
    $region21: #{linear_block_forward.3} parent=1 // pred_fallthru
      _
    %v35 = vld [vmem:[#allocation5] sm:$0xff]
    %v36 = vld [vmem:[%s0] sm:$0xf]
    %v37 = vld [vmem:[#allocation2] sm:$0xf]
    %v38 = vld [vmem:[#allocation2 + $0x4] sm:$0xf]
    %v39 = vld [vmem:[#allocation2 + $0x8] sm:$0xf]
    %v40 = vld [vmem:[#allocation2 + $0xc] sm:$0xf]
    %v41 = vld [vmem:[#allocation2 + $0x10] sm:$0xf]
    %v42 = vld [vmem:[#allocation2 + $0x14] sm:$0xf]
    %v43 = vld [vmem:[#allocation2 + $0x18] sm:$0xf]
    %v44 = vld [vmem:[#allocation2 + $0x1c] sm:$0xf]
    %v45 = vld [vmem:[#allocation2 + $0x20] sm:$0xf]
    %v46 = vld [vmem:[#allocation2 + $0x24] sm:$0xf]
    %v47 = vld [vmem:[#allocation2 + $0x28] sm:$0xf]
    %v48 = vld [vmem:[#allocation2 + $0x2c] sm:$0xf]
    %v49 = vld [vmem:[#allocation2 + $0x30] sm:$0xf]
    %v50 = vld [vmem:[#allocation2 + $0x34] sm:$0xf]
    %v51 = vld [vmem:[#allocation2 + $0x38] sm:$0xf]
    %v52 = vld [vmem:[#allocation2 + $0x3c] sm:$0xf]
    %v69 = vunpack.c.l.b16 %v37
    %v70 = vunpack.c.l.b16 %v38
    %v71 = vunpack.c.l.b16 %v39
    %v72 = vunpack.c.l.b16 %v40
    %v73 = vunpack.c.l.b16 %v41
    %v74 = vunpack.c.l.b16 %v42
    %v75 = vunpack.c.l.b16 %v43
    %v76 = vunpack.c.l.b16 %v44
    %v77 = vunpack.c.l.b16 %v45
    %v78 = vunpack.c.l.b16 %v46
    %v79 = vunpack.c.l.b16 %v47
    %v80 = vunpack.c.l.b16 %v48
    %v81 = vunpack.c.l.b16 %v49
    %v82 = vunpack.c.l.b16 %v50
    %v83 = vunpack.c.l.b16 %v51
    %v84 = vunpack.c.l.b16 %v52
    %v85 = vpack.c.b16 %v70, %v69
    %v86 = vpack.c.b16 %v72, %v71
    %v87 = vpack.c.b16 %v74, %v73
    %v88 = vpack.c.b16 %v76, %v75
    %v89 = vpack.c.b16 %v78, %v77
    %v90 = vpack.c.b16 %v80, %v79
    %v91 = vpack.c.b16 %v82, %v81
    %v92 = vpack.c.b16 %v84, %v83
    %101 = vmatprep.subr.bf16.mxu0 0
    %102 = vmatpush1.bf16.msra.mxu0 %v85
    %103 = vmatprep.subr.bf16.mxu0 0
    %104 = vmatpush1.bf16.msra.mxu0 %v86
    %105 = vmatprep.subr.bf16.mxu0 0
    %106 = vmatpush1.bf16.msra.mxu0 %v87
    %107 = vmatprep.subr.bf16.mxu0 0
    %108 = vmatpush1.bf16.msra.mxu0 %v88
    %109 = vmatprep.subr.bf16.mxu0 0
    %110 = vmatpush1.bf16.msra.mxu0 %v89
    %111 = vmatprep.subr.bf16.mxu0 0
    %112 = vmatpush1.bf16.msra.mxu0 %v90
    %113 = vmatprep.subr.bf16.mxu0 0
    %114 = vmatpush1.bf16.msra.mxu0 %v91
    %115 = vmatprep.subr.bf16.mxu0 0
    %116 = vmatpush1.bf16.msra.mxu0 %v92
    %117 = vmatprep.subr.bf16.mxu0 0
    %118 = vmatpush1.bf16.msra.mxu0 0
    %119 = vmatprep.subr.bf16.mxu0 0
    %120 = vmatpush1.bf16.msra.mxu0 0
    %121 = vmatprep.subr.bf16.mxu0 0
    %122 = vmatpush1.bf16.msra.mxu0 0
    %123 = vmatprep.subr.bf16.mxu0 0
    %124 = vmatpush1.bf16.msra.mxu0 0
    %125 = vmatprep.subr.bf16.mxu0 0
    %126 = vmatpush1.bf16.msra.mxu0 0
    %127 = vmatprep.subr.bf16.mxu0 0
    %128 = vmatpush1.bf16.msra.mxu0 0
    %129 = vmatprep.subr.bf16.mxu0 0
    %130 = vmatpush1.bf16.msra.mxu0 0
    %131 = vmatprep.subr.bf16.mxu0 0
    %132 = vmatpush1.bf16.msra.mxu0 0
    %133 = vmatprep.mubr.bf16.mxu0 0
    %134 = vmatmul.mubr.bf16.gmra.mrb[0].mxu0 %v36
    %v135 = vpop.f32.mrb[0].mxu0
    %v136 = vadd.f32 0.0, %v135
    %v137 = vpop.f32.mrb[0].mxu0
    %v138 = vpop.f32.mrb[0].mxu0
    %v139 = vpop.f32.mrb[0].mxu0
    %140 = vdwg.mxu0
    %v141 = vadd.f32 %v35, %v136
    %142 = vst [vmem:[#allocation5] sm:$0xff] %v141
    // Predicated region
    $region22: #{linear_block_forward.3} parent=1 // pred_check
      %p143 = pneg %p30
    $region23: #{linear_block_forward.3} parent=1 // pred_check_branch
      %145 = sbr.rel (%p143) target = $region25
    $region24: #{linear_block_forward.3} parent=1 // pred_region
      %v146 = vld [vmem:[#allocation5] sm:$0xff]
      %v147 = vld [vmem:[%s2] sm:$0x1]
      %v149 = vlaneseq
      %v150 = vshrl.u32 %v149, 7
      %v151 = vsub.s32 0, %v150
      %v152 = vrot.slane %v147, %v151
      %v154 = vadd.f32 %v146, %v152
      %155 = vst [vmem:[#allocation5] sm:$0xff] %v154
    $region25: #{linear_block_forward.3} parent=1 // pred_fallthru
      _
    // Predicated region
    $region26: #{linear_block_forward.3} parent=1 // pred_check
      _
    $region27: #{linear_block_forward.3} parent=1 // pred_check_branch
      %157 = sbr.rel (0) target = $region29
    $region28: #{linear_block_forward.3} parent=1 // pred_region
      %s159 = ssub.s32 128, 128
      %160 = vsyncadd [#allocation4], %s159
      %s162 = sshll.u32 [#allocation5], 4
      %s163 = int_to_ptr.vmem [resolvable:$true] %s162
      %165 = dma.vmem_to_hbm [thread:$0]  %s163, 128, %s3, [#allocation4]
    $region29: #{linear_block_forward.3} parent=1 // pred_fallthru
      _
    // Predicated region
    $region30: #{linear_block_forward.3} parent=1 // pred_check
      _
    $region31: #{linear_block_forward.3} parent=1 // pred_check_branch
      %167 = sbr.rel (0) target = $region33
    $region32: #{linear_block_forward.3} parent=1 // pred_region
      %168 = dma.done [#allocation4], 128
    $region33: #{linear_block_forward.3} parent=1 // pred_fallthru
      _
    %169 = vsyncpa [#allocation3], 1
    %170 = vsyncpa [#allocation4], 1

// kernel: linear_block_forward.2
$region0: #{linear_block_forward.2}
  #allocation0 [shape = 'u32[]', space=smem, size = 0x4, offset = 0x4, fixed_abs, tag = 'smem constant byte address 0x4 - core index']
  #allocation1 [shape = 'u32[144,128]{1,0:T(1,128)}', space=vmem, size = 0x12000, scoped, tag = 'internal scratch']
  %s0 = inlined_call_operand.vmem [shape: f32[8,128], index: 0, kind: input, shape index: {}]
  %s1 = inlined_call_operand.vmem [shape: f32[1,128], index: 1, kind: input, shape index: {}]
  %s2 = inlined_call_operand.vmem [shape: f32[1,128], index: 2, kind: input, shape index: {}]
  %s3 = inlined_call_operand.vmem [shape: bf16[8,128], index: 3, kind: output, shape index: {}]
  %s4 = sld [smem:[#allocation0]]
  $region22: #{linear_block_forward.2} parent=0
    _
  %s6 = ssub.s32 1, %s4
  %s7 = scalar_select 0, %s6, %s4
  // Predicated region
  $region2: #{linear_block_forward.2} parent=0 // pred_check
    _
  $region3: #{linear_block_forward.2} parent=0 // pred_check_branch
    %9 = sbr.rel (0) target = $region5
  $region4: #{linear_block_forward.2} parent=0 // pred_region
    _
  $region5: #{linear_block_forward.2} parent=0 // pred_fallthru
    _
  // Predicated region
  $region6: #{linear_block_forward.2} parent=0 // pred_check
    _
  $region7: #{linear_block_forward.2} parent=0 // pred_check_branch
    %11 = sbr.rel (0) target = $region9
  $region8: #{linear_block_forward.2} parent=0 // pred_region
    _
  $region9: #{linear_block_forward.2} parent=0 // pred_fallthru
    _
  // Predicated region
  $region10: #{linear_block_forward.2} parent=0 // pred_check
    _
  $region11: #{linear_block_forward.2} parent=0 // pred_check_branch
    %13 = sbr.rel (0) target = $region13
  $region12: #{linear_block_forward.2} parent=0 // pred_region
    _
  $region13: #{linear_block_forward.2} parent=0 // pred_fallthru
    _
  %v14 = vld [vmem:[%s0] sm:$0xff]
  %v15 = vld [vmem:[%s1] sm:$0x1]
  %v17 = vlaneseq
  %v18 = vshrl.u32 %v17, 7
  %v19 = vsub.s32 0, %v18
  %v20 = vrot.slane %v15, %v19
  %v22 = vmul.f32 %v14, %v20
  %v23 = vld [vmem:[%s2] sm:$0x1]
  %v25 = vlaneseq
  %v26 = vshrl.u32 %v25, 7
  %v27 = vsub.s32 0, %v26
  %v28 = vrot.slane %v23, %v27
  %v30 = vadd.f32 %v22, %v28
  %v31 = vsub.f32 0.0, %v30
  %v32 = vmul.f32 %v31, 1.442695
  %v33 = vpow.pop %v32
  %v34 = vadd.f32 %v33, 1.0
  %v35 = vrcp.pop %v34
  %v36 = vmul.f32 %v30, %v35
  %v37 = vpack.c.bf16 %v36, %v36
  %38 = vst [vmem:[%s3] sm:$0xf] %v37
  // Predicated region
  $region14: #{linear_block_forward.2} parent=0 // pred_check
    _
  $region15: #{linear_block_forward.2} parent=0 // pred_check_branch
    %40 = sbr.rel (0) target = $region17
  $region16: #{linear_block_forward.2} parent=0 // pred_region
    _
  $region17: #{linear_block_forward.2} parent=0 // pred_fallthru
    _
  // Predicated region
  $region18: #{linear_block_forward.2} parent=0 // pred_check
    _
  $region19: #{linear_block_forward.2} parent=0 // pred_check_branch
    %42 = sbr.rel (0) target = $region21
  $region20: #{linear_block_forward.2} parent=0 // pred_region
    _
  $region21: #{linear_block_forward.2} parent=0 // pred_fallthru
    _

</llo_original>
